<compile_context>
chip_gen: v5e
topology: v5e:2x2
jax: 0.10.0
libtpu: 0.0.40
codegen_flags: <defaults>
</compile_context>

<pallas_src>
import jax
import jax.numpy as jnp
from jax import lax
from jax.experimental import pallas as pl
from jax.experimental.pallas import tpu as pltpu

CLASSES = 3
EPSILON = 1e-7
LANES = 128


def make_f1_kernel(classes, epsilon, r, tr, ar, has_pad, ragged):
    """Build a kernel specialized (at trace time) for this shape/tiling."""

    def reduce_tile(x):
        # (tr, 128) -> (ar, 128) via pure vreg adds (sublane/lane preserving).
        if ar == tr:
            return x
        return jnp.sum(x.reshape(tr // 8, 8, LANES), axis=0)

    def kernel(yp_ref, yt_ref, out_ref, tp_acc, sp_acc, cnt_acc):
        i = pl.program_id(0)

        # Zero the small persistent accumulators on the first row-tile.
        @pl.when(i == 0)
        def _():
            tp_acc[...] = jnp.zeros_like(tp_acc)
            sp_acc[...] = jnp.zeros_like(sp_acc)
            cnt_acc[...] = jnp.zeros_like(cnt_acc)

        labels = yt_ref[...]                                  # (tr,128) int32

        # Validity mask, built only when actually needed.
        valid = None
        rmask = None
        if has_pad:
            valid = labels >= 0                               # in-row lane pad
        if ragged:
            rows_here = r - i * tr                            # >= tr except last
            row_ids = lax.broadcasted_iota(jnp.int32, (tr, LANES), 0)
            rmask = row_ids < rows_here                       # ragged last tile
            valid = rmask if valid is None else jnp.logical_and(valid, rmask)

        # Per-class fully-packed (tr,128) slabs; softmax over classes is
        # elementwise across C slabs (no XLU reduce in the hot loop).
        slabs = [yp_ref[c].astype(jnp.float32) for c in range(classes)]
        if ragged:
            # Rows past the array bound contain garbage: zero them so exp()
            # stays finite (the mask keeps them out of all accumulators).
            slabs = [jnp.where(rmask, s, 0.0) for s in slabs]

        m = slabs[0]
        for c in range(1, classes):
            m = jnp.maximum(m, slabs[c])
        es = [jnp.exp(s - m) for s in slabs]
        denom = es[0]
        for c in range(1, classes):
            denom = denom + es[c]

        # One approx reciprocal per column (EUP slot) + one Newton-Raphson
        # refinement step for f32-level accuracy.
        inv = pl.reciprocal(denom, approx=True)
        inv = inv * (2.0 - denom * inv)
        if valid is not None:
            inv = inv * valid.astype(jnp.float32)   # zero prob on padded cols

        for c in range(classes):
            p_c = es[c] * inv                                  # masked softmax prob
            oh_b = labels == c
            if valid is not None:
                oh_b = jnp.logical_and(oh_b, valid)
            oh = oh_b.astype(jnp.float32)
            tp_acc[c] = tp_acc[c] + reduce_tile(oh * p_c)
            sp_acc[c] = sp_acc[c] + reduce_tile(p_c)
            cnt_acc[c] = cnt_acc[c] + reduce_tile(oh)

        # Finalize on the last row-tile: the only cross-lane reductions.
        @pl.when(i == pl.num_programs(0) - 1)
        def _():
            tp = jnp.sum(jnp.sum(tp_acc[...], axis=1), axis=1, keepdims=True)   # (C,1)
            sp = jnp.sum(jnp.sum(sp_acc[...], axis=1), axis=1, keepdims=True)   # (C,1)
            cnt = jnp.sum(jnp.sum(cnt_acc[...], axis=1), axis=1, keepdims=True)  # (C,1)
            fp = sp - tp                                       # sum((1-onehot)*p)
            fn = cnt - tp                                      # sum(onehot*(1-p))
            precision = tp / (tp + fp + epsilon)
            recall = tp / (tp + fn + epsilon)
            f1 = 2.0 * precision * recall / (precision + recall + epsilon)
            f1 = jnp.clip(f1, epsilon, 1.0 - epsilon)
            out_ref[0, 0] = 1.0 - jnp.mean(f1)

    return kernel


def f1_loss(y_pred, y_true, *, classes=CLASSES, epsilon=EPSILON, block_rows=2048):
    """y_pred: [N, C] float, y_true: [N] int -> scalar float32 loss."""
    assert y_pred.ndim == 2
    assert y_true.ndim == 1
    n, c = y_pred.shape
    assert c == classes
    assert y_true.shape[0] == n

    # Minimal padding: only up to a multiple of 128 lanes (needed for the
    # packed (R,128) layout); padded samples carry label -1 and zero logits.
    n128 = ((n + LANES - 1) // LANES) * LANES
    r = n128 // LANES

    yp = y_pred                          # keep source dtype; cast to f32 in-kernel
    yt = y_true.astype(jnp.int32)
    if n128 != n:
        yp = jnp.pad(yp, ((0, n128 - n), (0, 0)))
        yt = jnp.pad(yt, (0, n128 - n), constant_values=-1)

    # Packed layout: (N,C) -> (C, R, 128); labels -> (R, 128).
    yp_t = jnp.transpose(yp).reshape(classes, r, LANES)
    yt_t = yt.reshape(r, LANES)

    # Row-tile size: multiple of 8 sublanes (unless the whole input is <8 rows).
    if r <= 8:
        tr = r
    else:
        tr = max(8, min(block_rows, (r // 8) * 8))
        tr = (tr // 8) * 8
    grid_n = pl.cdiv(r, tr)
    ar = 8 if tr % 8 == 0 else tr          # accumulator sublane rows
    has_pad = (n128 != n)
    ragged = (r % tr != 0)

    kernel = make_f1_kernel(classes, epsilon, r, tr, ar, has_pad, ragged)

    out = pl.pallas_call(
        kernel,
        out_shape=jax.ShapeDtypeStruct((1, 1), jnp.float32),
        grid_spec=pltpu.PrefetchScalarGridSpec(
            num_scalar_prefetch=0,
            grid=(grid_n,),
            in_specs=[
                pl.BlockSpec((classes, tr, LANES), lambda i: (0, i, 0)),
                pl.BlockSpec((tr, LANES), lambda i: (i, 0)),
            ],
            out_specs=pl.BlockSpec(memory_space=pltpu.SMEM),
            scratch_shapes=[
                pltpu.VMEM((classes, ar, LANES), jnp.float32),   # per-vreg tp
                pltpu.VMEM((classes, ar, LANES), jnp.float32),   # per-vreg sum(p)
                pltpu.VMEM((classes, ar, LANES), jnp.float32),   # per-vreg count
            ],
        ),
        compiler_params=pltpu.CompilerParams(
            dimension_semantics=("arbitrary",),   # batch row-tiles are a reduction
        ),
    )(yp_t, yt_t)
    return out[0, 0]


def f1_loss_ref(y_pred, y_true, classes=CLASSES, epsilon=EPSILON):
    y_true_oh = jax.nn.one_hot(y_true, classes, dtype=jnp.float32)
    p = jax.nn.softmax(y_pred.astype(jnp.float32), axis=1)
    tp = jnp.sum(y_true_oh * p, axis=0)
    fp = jnp.sum((1 - y_true_oh) * p, axis=0)
    fn = jnp.sum(y_true_oh * (1 - p), axis=0)
    precision = tp / (tp + fp + epsilon)
    recall = tp / (tp + fn + epsilon)
    f1 = 2 * precision * recall / (precision + recall + epsilon)
    f1 = jnp.clip(f1, epsilon, 1 - epsilon)
    return 1 - jnp.mean(f1)


if __name__ == "__main__":
    key = jax.random.PRNGKey(0)
    k1, k2, k3, k4 = jax.random.split(key, 4)

    # Small shape consistent with the module (batch=16, classes=3).
    N, C = 16, CLASSES
    y_pred = jax.random.normal(k1, (N, C), dtype=jnp.float32)
    y_true = jax.random.randint(k2, (N,), 0, C, dtype=jnp.int32)
    loss = f1_loss(y_pred, y_true)
    jax.block_until_ready(loss)
    ref = f1_loss_ref(y_pred, y_true)
    assert jnp.allclose(loss, ref, atol=1e-5, rtol=1e-5), (loss, ref)

    # Larger, non-128-aligned batch: exercises a multi-step grid, a ragged last
    # row-tile (row mask) and the in-row label==-1 padding mask.
    N2 = 2500
    y_pred2 = jax.random.normal(k3, (N2, C), dtype=jnp.float32)
    y_true2 = jax.random.randint(k4, (N2,), 0, C, dtype=jnp.int32)
    loss2 = f1_loss(y_pred2, y_true2, block_rows=8)   # forces 3 grid steps
    jax.block_until_ready(loss2)
    ref2 = f1_loss_ref(y_pred2, y_true2)
    assert jnp.allclose(loss2, ref2, atol=1e-5, rtol=1e-5), (loss2, ref2)

    # Same data through the default (large-tile) path.
    loss3 = f1_loss(y_pred2, y_true2)
    jax.block_until_ready(loss3)
    assert jnp.allclose(loss3, ref2, atol=1e-5, rtol=1e-5), (loss3, ref2)

    print("KERNEL_OK")
</pallas_src>

<mosaic_0001>
module attributes {stable_mosaic.version = 11 : i64} {
  func.func @kernel(%arg0: i32, %arg1: memref<3x1x128xf32, #tpu.memory_space<vmem>>, %arg2: memref<1x128xi32, #tpu.memory_space<vmem>>, %arg3: memref<1x1xf32, #tpu.memory_space<smem>>, %arg4: memref<3x1x128xf32, #tpu.memory_space<vmem>>, %arg5: memref<3x1x128xf32, #tpu.memory_space<vmem>>, %arg6: memref<3x1x128xf32, #tpu.memory_space<vmem>>) attributes {dimension_semantics = [#tpu.dimension_semantics<arbitrary>], iteration_bounds = array<i64: 1>, scalar_prefetch = 0 : i64, scratch_operands = 3 : i64, tpu.core_type = #tpu.core_type<tc>, window_params = [{transform_indices = @transform_0, window_bounds = array<i64: 3, 1, 128>}, {transform_indices = @transform_1, window_bounds = array<i64: 1, 128>}, {transform_indices = @transform_2, window_bounds = array<i64: 1, 1>}]} {
    %c0_i32 = arith.constant 0 : i32
    %0 = arith.cmpi eq, %arg0, %c0_i32 : i32
    %1 = arith.extui %0 : i1 to i32
    %c0_i32_0 = arith.constant 0 : i32
    %2 = arith.cmpi ne, %1, %c0_i32_0 : i32
    scf.if %2 {
      %cst_67 = arith.constant 0.000000e+00 : f32
      %108 = vector.broadcast %cst_67 : f32 to vector<3x1x128xf32>
      %c0_68 = arith.constant 0 : index
      %c0_69 = arith.constant 0 : index
      %c0_70 = arith.constant 0 : index
      %109 = vector.load %arg4[%c0_68, %c0_69, %c0_70] : memref<3x1x128xf32, #tpu.memory_space<vmem>>, vector<3x1x128xf32>
      tpu.vector_store %arg4[%c0_68, %c0_69, %c0_70], %108 {strides = array<i32>} : memref<3x1x128xf32, #tpu.memory_space<vmem>>, vector<3x1x128xf32>,
      %cst_71 = arith.constant 0.000000e+00 : f32
      %110 = vector.broadcast %cst_71 : f32 to vector<3x1x128xf32>
      %c0_72 = arith.constant 0 : index
      %c0_73 = arith.constant 0 : index
      %c0_74 = arith.constant 0 : index
      %111 = vector.load %arg5[%c0_72, %c0_73, %c0_74] : memref<3x1x128xf32, #tpu.memory_space<vmem>>, vector<3x1x128xf32>
      tpu.vector_store %arg5[%c0_72, %c0_73, %c0_74], %110 {strides = array<i32>} : memref<3x1x128xf32, #tpu.memory_space<vmem>>, vector<3x1x128xf32>,
      %cst_75 = arith.constant 0.000000e+00 : f32
      %112 = vector.broadcast %cst_75 : f32 to vector<3x1x128xf32>
      %c0_76 = arith.constant 0 : index
      %c0_77 = arith.constant 0 : index
      %c0_78 = arith.constant 0 : index
      %113 = vector.load %arg6[%c0_76, %c0_77, %c0_78] : memref<3x1x128xf32, #tpu.memory_space<vmem>>, vector<3x1x128xf32>
      tpu.vector_store %arg6[%c0_76, %c0_77, %c0_78], %112 {strides = array<i32>} : memref<3x1x128xf32, #tpu.memory_space<vmem>>, vector<3x1x128xf32>,
    } else {
    }
    %c0 = arith.constant 0 : index
    %c0_1 = arith.constant 0 : index
    %3 = vector.load %arg2[%c0, %c0_1] : memref<1x128xi32, #tpu.memory_space<vmem>>, vector<1x128xi32>
    %c0_i32_2 = arith.constant 0 : i32
    %4 = vector.broadcast %c0_i32_2 : i32 to vector<1x128xi32>
    %5 = arith.cmpi sge, %3, %4 : vector<1x128xi32>
    %c0_3 = arith.constant 0 : index
    %c0_4 = arith.constant 0 : index
    %c0_5 = arith.constant 0 : index
    %6 = vector.load %arg1[%c0_3, %c0_4, %c0_5] : memref<3x1x128xf32, #tpu.memory_space<vmem>>, vector<1x1x128xf32>
    %7 = vector.shape_cast %6 : vector<1x1x128xf32> to vector<1x128xf32>
    %c1 = arith.constant 1 : index
    %c0_6 = arith.constant 0 : index
    %c0_7 = arith.constant 0 : index
    %8 = vector.load %arg1[%c1, %c0_6, %c0_7] : memref<3x1x128xf32, #tpu.memory_space<vmem>>, vector<1x1x128xf32>
    %9 = vector.shape_cast %8 : vector<1x1x128xf32> to vector<1x128xf32>
    %c2 = arith.constant 2 : index
    %c0_8 = arith.constant 0 : index
    %c0_9 = arith.constant 0 : index
    %10 = vector.load %arg1[%c2, %c0_8, %c0_9] : memref<3x1x128xf32, #tpu.memory_space<vmem>>, vector<1x1x128xf32>
    %11 = vector.shape_cast %10 : vector<1x1x128xf32> to vector<1x128xf32>
    %12 = arith.maximumf %7, %9 : vector<1x128xf32>
    %13 = arith.maximumf %12, %11 : vector<1x128xf32>
    %14 = arith.subf %7, %13 : vector<1x128xf32>
    %15 = math.exp %14 : vector<1x128xf32>
    %16 = arith.subf %9, %13 : vector<1x128xf32>
    %17 = math.exp %16 : vector<1x128xf32>
    %18 = arith.subf %11, %13 : vector<1x128xf32>
    %19 = math.exp %18 : vector<1x128xf32>
    %20 = arith.addf %15, %17 : vector<1x128xf32>
    %21 = arith.addf %20, %19 : vector<1x128xf32>
    %22 = tpu.reciprocal %21 {approx = true} : vector<1x128xf32> -> vector<1x128xf32>
    %23 = arith.mulf %21, %22 : vector<1x128xf32>
    %cst = arith.constant 2.000000e+00 : f32
    %24 = vector.broadcast %cst : f32 to vector<1x128xf32>
    %25 = arith.subf %24, %23 : vector<1x128xf32>
    %26 = arith.mulf %22, %25 : vector<1x128xf32>
    %27 = arith.extui %5 : vector<1x128xi1> to vector<1x128xi32>
    %28 = arith.sitofp %27 : vector<1x128xi32> to vector<1x128xf32>
    %29 = arith.mulf %26, %28 : vector<1x128xf32>
    %30 = arith.mulf %15, %29 : vector<1x128xf32>
    %c0_i32_10 = arith.constant 0 : i32
    %31 = vector.broadcast %c0_i32_10 : i32 to vector<1x128xi32>
    %32 = arith.cmpi eq, %3, %31 : vector<1x128xi32>
    %33 = arith.andi %32, %5 : vector<1x128xi1>
    %34 = arith.extui %33 : vector<1x128xi1> to vector<1x128xi32>
    %35 = arith.sitofp %34 : vector<1x128xi32> to vector<1x128xf32>
    %c0_11 = arith.constant 0 : index
    %c0_12 = arith.constant 0 : index
    %c0_13 = arith.constant 0 : index
    %36 = vector.load %arg4[%c0_11, %c0_12, %c0_13] : memref<3x1x128xf32, #tpu.memory_space<vmem>>, vector<1x1x128xf32>
    %37 = vector.shape_cast %36 : vector<1x1x128xf32> to vector<1x128xf32>
    %38 = arith.mulf %35, %30 : vector<1x128xf32>
    %39 = arith.addf %37, %38 : vector<1x128xf32>
    %c0_14 = arith.constant 0 : index
    %c0_15 = arith.constant 0 : index
    %c0_16 = arith.constant 0 : index
    %40 = vector.load %arg4[%c0_14, %c0_15, %c0_16] : memref<3x1x128xf32, #tpu.memory_space<vmem>>, vector<1x1x128xf32>
    %41 = vector.shape_cast %40 : vector<1x1x128xf32> to vector<1x128xf32>
    %42 = vector.shape_cast %39 : vector<1x128xf32> to vector<1x1x128xf32>
    tpu.vector_store %arg4[%c0_14, %c0_15, %c0_16], %42 {strides = array<i32>} : memref<3x1x128xf32, #tpu.memory_space<vmem>>, vector<1x1x128xf32>,
    %c0_17 = arith.constant 0 : index
    %c0_18 = arith.constant 0 : index
    %c0_19 = arith.constant 0 : index
    %43 = vector.load %arg5[%c0_17, %c0_18, %c0_19] : memref<3x1x128xf32, #tpu.memory_space<vmem>>, vector<1x1x128xf32>
    %44 = vector.shape_cast %43 : vector<1x1x128xf32> to vector<1x128xf32>
    %45 = arith.addf %44, %30 : vector<1x128xf32>
    %c0_20 = arith.constant 0 : index
    %c0_21 = arith.constant 0 : index
    %c0_22 = arith.constant 0 : index
    %46 = vector.load %arg5[%c0_20, %c0_21, %c0_22] : memref<3x1x128xf32, #tpu.memory_space<vmem>>, vector<1x1x128xf32>
    %47 = vector.shape_cast %46 : vector<1x1x128xf32> to vector<1x128xf32>
    %48 = vector.shape_cast %45 : vector<1x128xf32> to vector<1x1x128xf32>
    tpu.vector_store %arg5[%c0_20, %c0_21, %c0_22], %48 {strides = array<i32>} : memref<3x1x128xf32, #tpu.memory_space<vmem>>, vector<1x1x128xf32>,
    %c0_23 = arith.constant 0 : index
    %c0_24 = arith.constant 0 : index
    %c0_25 = arith.constant 0 : index
    %49 = vector.load %arg6[%c0_23, %c0_24, %c0_25] : memref<3x1x128xf32, #tpu.memory_space<vmem>>, vector<1x1x128xf32>
    %50 = vector.shape_cast %49 : vector<1x1x128xf32> to vector<1x128xf32>
    %51 = arith.addf %50, %35 : vector<1x128xf32>
    %c0_26 = arith.constant 0 : index
    %c0_27 = arith.constant 0 : index
    %c0_28 = arith.constant 0 : index
    %52 = vector.load %arg6[%c0_26, %c0_27, %c0_28] : memref<3x1x128xf32, #tpu.memory_space<vmem>>, vector<1x1x128xf32>
    %53 = vector.shape_cast %52 : vector<1x1x128xf32> to vector<1x128xf32>
    %54 = vector.shape_cast %51 : vector<1x128xf32> to vector<1x1x128xf32>
    tpu.vector_store %arg6[%c0_26, %c0_27, %c0_28], %54 {strides = array<i32>} : memref<3x1x128xf32, #tpu.memory_space<vmem>>, vector<1x1x128xf32>,
    %55 = arith.mulf %17, %29 : vector<1x128xf32>
    %c1_i32 = arith.constant 1 : i32
    %56 = vector.broadcast %c1_i32 : i32 to vector<1x128xi32>
    %57 = arith.cmpi eq, %3, %56 : vector<1x128xi32>
    %58 = arith.andi %57, %5 : vector<1x128xi1>
    %59 = arith.extui %58 : vector<1x128xi1> to vector<1x128xi32>
    %60 = arith.sitofp %59 : vector<1x128xi32> to vector<1x128xf32>
    %c1_29 = arith.constant 1 : index
    %c0_30 = arith.constant 0 : index
    %c0_31 = arith.constant 0 : index
    %61 = vector.load %arg4[%c1_29, %c0_30, %c0_31] : memref<3x1x128xf32, #tpu.memory_space<vmem>>, vector<1x1x128xf32>
    %62 = vector.shape_cast %61 : vector<1x1x128xf32> to vector<1x128xf32>
    %63 = arith.mulf %60, %55 : vector<1x128xf32>
    %64 = arith.addf %62, %63 : vector<1x128xf32>
    %c1_32 = arith.constant 1 : index
    %c0_33 = arith.constant 0 : index
    %c0_34 = arith.constant 0 : index
    %65 = vector.load %arg4[%c1_32, %c0_33, %c0_34] : memref<3x1x128xf32, #tpu.memory_space<vmem>>, vector<1x1x128xf32>
    %66 = vector.shape_cast %65 : vector<1x1x128xf32> to vector<1x128xf32>
    %67 = vector.shape_cast %64 : vector<1x128xf32> to vector<1x1x128xf32>
    tpu.vector_store %arg4[%c1_32, %c0_33, %c0_34], %67 {strides = array<i32>} : memref<3x1x128xf32, #tpu.memory_space<vmem>>, vector<1x1x128xf32>,
    %c1_35 = arith.constant 1 : index
    %c0_36 = arith.constant 0 : index
    %c0_37 = arith.constant 0 : index
    %68 = vector.load %arg5[%c1_35, %c0_36, %c0_37] : memref<3x1x128xf32, #tpu.memory_space<vmem>>, vector<1x1x128xf32>
    %69 = vector.shape_cast %68 : vector<1x1x128xf32> to vector<1x128xf32>
    %70 = arith.addf %69, %55 : vector<1x128xf32>
    %c1_38 = arith.constant 1 : index
    %c0_39 = arith.constant 0 : index
    %c0_40 = arith.constant 0 : index
    %71 = vector.load %arg5[%c1_38, %c0_39, %c0_40] : memref<3x1x128xf32, #tpu.memory_space<vmem>>, vector<1x1x128xf32>
    %72 = vector.shape_cast %71 : vector<1x1x128xf32> to vector<1x128xf32>
    %73 = vector.shape_cast %70 : vector<1x128xf32> to vector<1x1x128xf32>
    tpu.vector_store %arg5[%c1_38, %c0_39, %c0_40], %73 {strides = array<i32>} : memref<3x1x128xf32, #tpu.memory_space<vmem>>, vector<1x1x128xf32>,
    %c1_41 = arith.constant 1 : index
    %c0_42 = arith.constant 0 : index
    %c0_43 = arith.constant 0 : index
    %74 = vector.load %arg6[%c1_41, %c0_42, %c0_43] : memref<3x1x128xf32, #tpu.memory_space<vmem>>, vector<1x1x128xf32>
    %75 = vector.shape_cast %74 : vector<1x1x128xf32> to vector<1x128xf32>
    %76 = arith.addf %75, %60 : vector<1x128xf32>
    %c1_44 = arith.constant 1 : index
    %c0_45 = arith.constant 0 : index
    %c0_46 = arith.constant 0 : index
    %77 = vector.load %arg6[%c1_44, %c0_45, %c0_46] : memref<3x1x128xf32, #tpu.memory_space<vmem>>, vector<1x1x128xf32>
    %78 = vector.shape_cast %77 : vector<1x1x128xf32> to vector<1x128xf32>
    %79 = vector.shape_cast %76 : vector<1x128xf32> to vector<1x1x128xf32>
    tpu.vector_store %arg6[%c1_44, %c0_45, %c0_46], %79 {strides = array<i32>} : memref<3x1x128xf32, #tpu.memory_space<vmem>>, vector<1x1x128xf32>,
    %80 = arith.mulf %19, %29 : vector<1x128xf32>
    %c2_i32 = arith.constant 2 : i32
    %81 = vector.broadcast %c2_i32 : i32 to vector<1x128xi32>
    %82 = arith.cmpi eq, %3, %81 : vector<1x128xi32>
    %83 = arith.andi %82, %5 : vector<1x128xi1>
    %84 = arith.extui %83 : vector<1x128xi1> to vector<1x128xi32>
    %85 = arith.sitofp %84 : vector<1x128xi32> to vector<1x128xf32>
    %c2_47 = arith.constant 2 : index
    %c0_48 = arith.constant 0 : index
    %c0_49 = arith.constant 0 : index
    %86 = vector.load %arg4[%c2_47, %c0_48, %c0_49] : memref<3x1x128xf32, #tpu.memory_space<vmem>>, vector<1x1x128xf32>
    %87 = vector.shape_cast %86 : vector<1x1x128xf32> to vector<1x128xf32>
    %88 = arith.mulf %85, %80 : vector<1x128xf32>
    %89 = arith.addf %87, %88 : vector<1x128xf32>
    %c2_50 = arith.constant 2 : index
    %c0_51 = arith.constant 0 : index
    %c0_52 = arith.constant 0 : index
    %90 = vector.load %arg4[%c2_50, %c0_51, %c0_52] : memref<3x1x128xf32, #tpu.memory_space<vmem>>, vector<1x1x128xf32>
    %91 = vector.shape_cast %90 : vector<1x1x128xf32> to vector<1x128xf32>
    %92 = vector.shape_cast %89 : vector<1x128xf32> to vector<1x1x128xf32>
    tpu.vector_store %arg4[%c2_50, %c0_51, %c0_52], %92 {strides = array<i32>} : memref<3x1x128xf32, #tpu.memory_space<vmem>>, vector<1x1x128xf32>,
    %c2_53 = arith.constant 2 : index
    %c0_54 = arith.constant 0 : index
    %c0_55 = arith.constant 0 : index
    %93 = vector.load %arg5[%c2_53, %c0_54, %c0_55] : memref<3x1x128xf32, #tpu.memory_space<vmem>>, vector<1x1x128xf32>
    %94 = vector.shape_cast %93 : vector<1x1x128xf32> to vector<1x128xf32>
    %95 = arith.addf %94, %80 : vector<1x128xf32>
    %c2_56 = arith.constant 2 : index
    %c0_57 = arith.constant 0 : index
    %c0_58 = arith.constant 0 : index
    %96 = vector.load %arg5[%c2_56, %c0_57, %c0_58] : memref<3x1x128xf32, #tpu.memory_space<vmem>>, vector<1x1x128xf32>
    %97 = vector.shape_cast %96 : vector<1x1x128xf32> to vector<1x128xf32>
    %98 = vector.shape_cast %95 : vector<1x128xf32> to vector<1x1x128xf32>
    tpu.vector_store %arg5[%c2_56, %c0_57, %c0_58], %98 {strides = array<i32>} : memref<3x1x128xf32, #tpu.memory_space<vmem>>, vector<1x1x128xf32>,
    %c2_59 = arith.constant 2 : index
    %c0_60 = arith.constant 0 : index
    %c0_61 = arith.constant 0 : index
    %99 = vector.load %arg6[%c2_59, %c0_60, %c0_61] : memref<3x1x128xf32, #tpu.memory_space<vmem>>, vector<1x1x128xf32>
    %100 = vector.shape_cast %99 : vector<1x1x128xf32> to vector<1x128xf32>
    %101 = arith.addf %100, %85 : vector<1x128xf32>
    %c2_62 = arith.constant 2 : index
    %c0_63 = arith.constant 0 : index
    %c0_64 = arith.constant 0 : index
    %102 = vector.load %arg6[%c2_62, %c0_63, %c0_64] : memref<3x1x128xf32, #tpu.memory_space<vmem>>, vector<1x1x128xf32>
    %103 = vector.shape_cast %102 : vector<1x1x128xf32> to vector<1x128xf32>
    %104 = vector.shape_cast %101 : vector<1x128xf32> to vector<1x1x128xf32>
    tpu.vector_store %arg6[%c2_62, %c0_63, %c0_64], %104 {strides = array<i32>} : memref<3x1x128xf32, #tpu.memory_space<vmem>>, vector<1x1x128xf32>,
    %c0_i32_65 = arith.constant 0 : i32
    %105 = arith.cmpi eq, %arg0, %c0_i32_65 : i32
    %106 = arith.extui %105 : i1 to i32
    %c0_i32_66 = arith.constant 0 : i32
    %107 = arith.cmpi ne, %106, %c0_i32_66 : i32
    scf.if %107 {
      %c0_67 = arith.constant 0 : index
      %c0_68 = arith.constant 0 : index
      %c0_69 = arith.constant 0 : index
      %108 = vector.load %arg4[%c0_67, %c0_68, %c0_69] : memref<3x1x128xf32, #tpu.memory_space<vmem>>, vector<3x1x128xf32>
      %cst_70 = arith.constant dense<0.000000e+00> : vector<3x128xf32>
      %109 = vector.multi_reduction <add>, %108, %cst_70 [1] : vector<3x1x128xf32> to vector<3x128xf32>
      %cst_71 = arith.constant dense<0.000000e+00> : vector<3xf32>
      %110 = vector.multi_reduction <add>, %109, %cst_71 [1] : vector<3x128xf32> to vector<3xf32>
      %111 = vector.shape_cast %110 : vector<3xf32> to vector<3x1xf32>
      %c0_72 = arith.constant 0 : index
      %c0_73 = arith.constant 0 : index
      %c0_74 = arith.constant 0 : index
      %112 = vector.load %arg5[%c0_72, %c0_73, %c0_74] : memref<3x1x128xf32, #tpu.memory_space<vmem>>, vector<3x1x128xf32>
      %cst_75 = arith.constant dense<0.000000e+00> : vector<3x128xf32>
      %113 = vector.multi_reduction <add>, %112, %cst_75 [1] : vector<3x1x128xf32> to vector<3x128xf32>
      %cst_76 = arith.constant dense<0.000000e+00> : vector<3xf32>
      %114 = vector.multi_reduction <add>, %113, %cst_76 [1] : vector<3x128xf32> to vector<3xf32>
      %115 = vector.shape_cast %114 : vector<3xf32> to vector<3x1xf32>
      %c0_77 = arith.constant 0 : index
      %c0_78 = arith.constant 0 : index
      %c0_79 = arith.constant 0 : index
      %116 = vector.load %arg6[%c0_77, %c0_78, %c0_79] : memref<3x1x128xf32, #tpu.memory_space<vmem>>, vector<3x1x128xf32>
      %cst_80 = arith.constant dense<0.000000e+00> : vector<3x128xf32>
      %117 = vector.multi_reduction <add>, %116, %cst_80 [1] : vector<3x1x128xf32> to vector<3x128xf32>
      %cst_81 = arith.constant dense<0.000000e+00> : vector<3xf32>
      %118 = vector.multi_reduction <add>, %117, %cst_81 [1] : vector<3x128xf32> to vector<3xf32>
      %119 = vector.shape_cast %118 : vector<3xf32> to vector<3x1xf32>
      %120 = arith.subf %115, %111 : vector<3x1xf32>
      %121 = arith.subf %119, %111 : vector<3x1xf32>
      %122 = arith.addf %111, %120 : vector<3x1xf32>
      %cst_82 = arith.constant 1.000000e-07 : f32
      %123 = vector.broadcast %cst_82 : f32 to vector<3x1xf32>
      %124 = arith.addf %122, %123 : vector<3x1xf32>
      %125 = arith.divf %111, %124 : vector<3x1xf32>
      %126 = arith.addf %111, %121 : vector<3x1xf32>
      %cst_83 = arith.constant 1.000000e-07 : f32
      %127 = vector.broadcast %cst_83 : f32 to vector<3x1xf32>
      %128 = arith.addf %126, %127 : vector<3x1xf32>
      %129 = arith.divf %111, %128 : vector<3x1xf32>
      %cst_84 = arith.constant 2.000000e+00 : f32
      %130 = vector.broadcast %cst_84 : f32 to vector<3x1xf32>
      %131 = arith.mulf %130, %125 : vector<3x1xf32>
      %132 = arith.mulf %131, %129 : vector<3x1xf32>
      %133 = arith.addf %125, %129 : vector<3x1xf32>
      %cst_85 = arith.constant 1.000000e-07 : f32
      %134 = vector.broadcast %cst_85 : f32 to vector<3x1xf32>
      %135 = arith.addf %133, %134 : vector<3x1xf32>
      %136 = arith.divf %132, %135 : vector<3x1xf32>
      %cst_86 = arith.constant 1.000000e-07 : f32
      %cst_87 = arith.constant 0.99999988 : f32
      %137 = vector.broadcast %cst_86 : f32 to vector<3x1xf32>
      %138 = arith.maximumf %137, %136 : vector<3x1xf32>
      %139 = vector.broadcast %cst_87 : f32 to vector<3x1xf32>
      %140 = arith.minimumf %139, %138 : vector<3x1xf32>
      %141 = vector.shape_cast %140 : vector<3x1xf32> to vector<1x3x1xf32>
      %cst_88 = arith.constant dense<0.000000e+00> : vector<1xf32>
      %142 = vector.multi_reduction <add>, %141, %cst_88 [1, 2] : vector<1x3x1xf32> to vector<1xf32>
      %143 = vector.shape_cast %142 : vector<1xf32> to vector<1x1x1xf32>
      %144 = vector.extract %143[0, 0, 0] : f32 from vector<1x1x1xf32>
      %cst_89 = arith.constant 3.000000e+00 : f32
      %145 = arith.divf %144, %cst_89 : f32
      %cst_90 = arith.constant 1.000000e+00 : f32
      %146 = arith.subf %cst_90, %145 : f32
      %c0_91 = arith.constant 0 : index
      %c0_92 = arith.constant 0 : index
      %147 = memref.load %arg3[%c0_91, %c0_92] : memref<1x1xf32, #tpu.memory_space<smem>>
      memref.store %146, %arg3[%c0_91, %c0_92] : memref<1x1xf32, #tpu.memory_space<smem>>
    } else {
    }
    return
  }
  func.func @transform_0(%arg0: i32) -> (i32, i32, i32) {
    %c0_i32 = arith.constant 0 : i32
    %c0_i32_0 = arith.constant 0 : i32
    %c0_i32_1 = arith.constant 0 : i32
    return %c0_i32, %arg0, %c0_i32_0 : i32, i32, i32
  }
  func.func @transform_1(%arg0: i32) -> (i32, i32) {
    %c0_i32 = arith.constant 0 : i32
    %c0_i32_0 = arith.constant 0 : i32
    return %arg0, %c0_i32 : i32, i32
  }
  func.func @transform_2(%arg0: i32) -> (i32, i32) {
    %c0_i32 = arith.constant 0 : i32
    %c0_i32_0 = arith.constant 0 : i32
    %c0_i32_1 = arith.constant 0 : i32
    return %c0_i32, %c0_i32_0 : i32, i32
  }
}

</mosaic_0001>

<llo_original>
// kernel: tpu_custom_call.1
$region0: #{tpu_custom_call.1}
  #allocation0 [shape = 'u32[]', space=smem, size = 0x4, offset = 0x4, fixed_abs, tag = 'smem constant byte address 0x4 - core index']
  #allocation1 [shape = 'u32[72,128]{1,0:T(1,128)}', space=vmem, size = 0x9000, scoped, tag = 'internal scratch']
  #allocation2 [shape = 'f32[3,1,128]{2,1,0:T(1,128)}', space=vmem, size = 0x600, scoped, tag = 'scratch operand']
  #allocation3 [shape = 'f32[3,1,128]{2,1,0:T(1,128)}', space=vmem, size = 0x600, scoped, tag = 'scratch operand']
  #allocation4 [shape = 'f32[3,1,128]{2,1,0:T(1,128)}', space=vmem, size = 0x600, scoped, tag = 'scratch operand']
  %s0 = inlined_call_operand.hbm [shape: f32[3,1,128], index: 0, kind: input, shape index: {}]
  %s1 = inlined_call_operand.hbm [shape: s32[1,128], index: 1, kind: input, shape index: {}]
  %s2 = inlined_call_operand.hbm [shape: f32[1,1], index: 2, kind: output, shape index: {}]
  %s3 = sld [smem:[#allocation0]]
  $region34: #{tpu_custom_call.1} parent=0
    _
  %s5 = ssub.s32 1, %s3
  %s6 = scalar_select 0, %s5, %s3
  $region1: #{tpu_custom_call.1} parent=0
    #allocation5 [shape = 'u8[1536]{0}', space=vmem, size = 0x800, scoped, tag = 'input window, operand 0, single buffered']
    #allocation6 [shape = 's32[1]{0}', space=sflag, size = 0x4, scoped, tag = 'scoped memory for tpu_custom_call.1']
    #allocation7 [shape = 's32[1]{0}', space=sflag, size = 0x4, scoped, tag = 'scoped memory for tpu_custom_call.1']
    #allocation8 [shape = 'u8[512]{0}', space=vmem, size = 0x400, scoped, tag = 'input window, operand 1, single buffered']
    #allocation9 [shape = 's32[1]{0}', space=sflag, size = 0x4, scoped, tag = 'scoped memory for tpu_custom_call.1']
    #allocation10 [shape = 'u8[512]{0}', space=smem, size = 0x200, scoped, tag = 'output window, operand 0, single buffered']
    %7 = vsyncpa [#allocation6], 0
    %8 = vsyncpa [#allocation9], 0
    %9 = vsyncpa [#allocation7], 0
    // Predicated region
    $region2: #{tpu_custom_call.1} parent=1 // pred_check
      _
    $region3: #{tpu_custom_call.1} parent=1 // pred_check_branch
      %11 = sbr.rel (0) target = $region5
    $region4: #{tpu_custom_call.1} parent=1 // pred_region
      %13 = vsyncadd [#allocation6], 0
      %s14 = sshll.u32 %s0, 4
      %s15 = int_to_ptr.hbm [resolvable:$true] %s14
      %s16 = sshll.u32 [#allocation5], 4
      %s17 = int_to_ptr.vmem [resolvable:$true] %s16
      %22 = dma.hbm_to_vmem [thread:$0]  %s15, 48, %s17, [#allocation6], 16, 16, 1
    $region5: #{tpu_custom_call.1} parent=1 // pred_fallthru
      _
    // Predicated region
    $region6: #{tpu_custom_call.1} parent=1 // pred_check
      _
    $region7: #{tpu_custom_call.1} parent=1 // pred_check_branch
      %24 = sbr.rel (0) target = $region9
    $region8: #{tpu_custom_call.1} parent=1 // pred_region
      %26 = vsyncadd [#allocation9], 0
      %s28 = sshll.u32 %s1, 4
      %s29 = int_to_ptr.hbm [resolvable:$true] %s28
      %s30 = sshll.u32 [#allocation8], 4
      %s31 = int_to_ptr.vmem [resolvable:$true] %s30
      %33 = dma.hbm_to_vmem [thread:$0]  %s29, 16, %s31, [#allocation9]
    $region9: #{tpu_custom_call.1} parent=1 // pred_fallthru
      _
    // Predicated region
    $region10: #{tpu_custom_call.1} parent=1 // pred_check
      _
    $region11: #{tpu_custom_call.1} parent=1 // pred_check_branch
      %35 = sbr.rel (0) target = $region13
    $region12: #{tpu_custom_call.1} parent=1 // pred_region
      %37 = dma.done [#allocation6], 48
    $region13: #{tpu_custom_call.1} parent=1 // pred_fallthru
      _
    // Predicated region
    $region14: #{tpu_custom_call.1} parent=1 // pred_check
      _
    $region15: #{tpu_custom_call.1} parent=1 // pred_check_branch
      %39 = sbr.rel (0) target = $region17
    $region16: #{tpu_custom_call.1} parent=1 // pred_region
      %41 = dma.done [#allocation9], 16
    $region17: #{tpu_custom_call.1} parent=1 // pred_fallthru
      _
    %p42 = scmp.eq.s32.totalorder 0, 0
    // Predicated region
    $region18: #{tpu_custom_call.1} parent=1 // pred_check
      %p43 = pneg %p42
    $region19: #{tpu_custom_call.1} parent=1 // pred_check_branch
      %45 = sbr.rel (%p43) target = $region21
    $region20: #{tpu_custom_call.1} parent=1 // pred_region
      %46 = vst [vmem:[#allocation2] sm:$0x1] 0.0
      %47 = vst [vmem:[#allocation2 + $0x1] sm:$0x1] 0.0
      %48 = vst [vmem:[#allocation2 + $0x2] sm:$0x1] 0.0
      %49 = vst [vmem:[#allocation3] sm:$0x1] 0.0
      %50 = vst [vmem:[#allocation3 + $0x1] sm:$0x1] 0.0
      %51 = vst [vmem:[#allocation3 + $0x2] sm:$0x1] 0.0
      %52 = vst [vmem:[#allocation4] sm:$0x1] 0.0
      %53 = vst [vmem:[#allocation4 + $0x1] sm:$0x1] 0.0
      %54 = vst [vmem:[#allocation4 + $0x2] sm:$0x1] 0.0
    $region21: #{tpu_custom_call.1} parent=1 // pred_fallthru
      _
    %v55 = vld [vmem:[#allocation8] sm:$0x1]
    %vm56 = vcmp.ge.s32.totalorder %v55, 0
    %v57 = vld [vmem:[#allocation5] sm:$0x1]
    %s58 = scalar_lea.vmem [#allocation5], 1
    %v59 = vld [vmem:[%s58] sm:$0x1]
    %s60 = scalar_lea.vmem [#allocation5], 2
    %v61 = vld [vmem:[%s60] sm:$0x1]
    %v62 = vmax.f32 %v57, %v59
    %v63 = vmax.f32 %v62, %v61
    %v64 = vsub.f32 %v57, %v63
    %v65 = vmul.f32 %v64, 1.442695
    %v66 = vpow.pop %v65
    %v67 = vsub.f32 %v59, %v63
    %v68 = vmul.f32 %v67, 1.442695
    %v69 = vpow.pop %v68
    %v70 = vsub.f32 %v61, %v63
    %v71 = vmul.f32 %v70, 1.442695
    %v72 = vpow.pop %v71
    %v73 = vadd.f32 %v66, %v69
    %v74 = vadd.f32 %v73, %v72
    %v75 = vrcp.pop %v74
    %v76 = vmul.f32 %v74, %v75
    %v77 = vsub.f32 2.0, %v76
    %v78 = vmul.f32 %v75, %v77
    %v79 = vsel %vm56, 1, 0
    %v80 = vcvt.s32.f32 %v79
    %v81 = vmul.f32 %v78, %v80
    %v82 = vmul.f32 %v66, %v81
    %vm83 = vcmp.eq.s32.totalorder %v55, 0
    %vm84 = vmand %vm83, %vm56
    %v85 = vsel %vm84, 1, 0
    %v86 = vcvt.s32.f32 %v85
    %v87 = vld [vmem:[#allocation2] sm:$0x1]
    %v88 = vmul.f32 %v86, %v82
    %v89 = vadd.f32 %v87, %v88
    %90 = vst [vmem:[#allocation2] sm:$0x1] %v89
    %v91 = vld [vmem:[#allocation3] sm:$0x1]
    %v92 = vadd.f32 %v91, %v82
    %93 = vst [vmem:[#allocation3] sm:$0x1] %v92
    %v94 = vld [vmem:[#allocation4] sm:$0x1]
    %v95 = vadd.f32 %v94, %v86
    %96 = vst [vmem:[#allocation4] sm:$0x1] %v95
    %v97 = vmul.f32 %v69, %v81
    %vm98 = vcmp.eq.s32.totalorder %v55, 1
    %vm99 = vmand %vm98, %vm56
    %v100 = vsel %vm99, 1, 0
    %v101 = vcvt.s32.f32 %v100
    %s102 = scalar_lea.vmem [#allocation2], 1
    %v103 = vld [vmem:[%s102] sm:$0x1]
    %v104 = vmul.f32 %v101, %v97
    %v105 = vadd.f32 %v103, %v104
    %106 = vst [vmem:[%s102] sm:$0x1] %v105
    %s107 = scalar_lea.vmem [#allocation3], 1
    %v108 = vld [vmem:[%s107] sm:$0x1]
    %v109 = vadd.f32 %v108, %v97
    %110 = vst [vmem:[%s107] sm:$0x1] %v109
    %s111 = scalar_lea.vmem [#allocation4], 1
    %v112 = vld [vmem:[%s111] sm:$0x1]
    %v113 = vadd.f32 %v112, %v101
    %114 = vst [vmem:[%s111] sm:$0x1] %v113
    %v115 = vmul.f32 %v72, %v81
    %vm116 = vcmp.eq.s32.totalorder %v55, 2
    %vm117 = vmand %vm116, %vm56
    %v118 = vsel %vm117, 1, 0
    %v119 = vcvt.s32.f32 %v118
    %s120 = scalar_lea.vmem [#allocation2], 2
    %v121 = vld [vmem:[%s120] sm:$0x1]
    %v122 = vmul.f32 %v119, %v115
    %v123 = vadd.f32 %v121, %v122
    %124 = vst [vmem:[%s120] sm:$0x1] %v123
    %s125 = scalar_lea.vmem [#allocation3], 2
    %v126 = vld [vmem:[%s125] sm:$0x1]
    %v127 = vadd.f32 %v126, %v115
    %128 = vst [vmem:[%s125] sm:$0x1] %v127
    %s129 = scalar_lea.vmem [#allocation4], 2
    %v130 = vld [vmem:[%s129] sm:$0x1]
    %v131 = vadd.f32 %v130, %v119
    %132 = vst [vmem:[%s129] sm:$0x1] %v131
    // Predicated region
    $region22: #{tpu_custom_call.1} parent=1 // pred_check
      %p133 = pneg %p42
    $region23: #{tpu_custom_call.1} parent=1 // pred_check_branch
      %135 = sbr.rel (%p133) target = $region25
    $region24: #{tpu_custom_call.1} parent=1 // pred_region
      %v136 = vld [vmem:[#allocation2] sm:$0x1]
      %v137 = vld [vmem:[#allocation2 + $0x1] sm:$0x1]
      %v138 = vld [vmem:[#allocation2 + $0x2] sm:$0x1]
      %v139 = vadd.f32 %v136, 0.0
      %v140 = vadd.f32 %v137, 0.0
      %v141 = vadd.f32 %v138, 0.0
      %145 = vst [vmem:[#allocation1] ss:$9 sm:$0xff] %v139
      %s146 = scalar_lea.vmem [#allocation1], 1
      %147 = vst [vmem:[%s146] ss:$9 sm:$0xff] %v140
      %s148 = scalar_lea.vmem [#allocation1], 2
      %149 = vst [vmem:[%s148] ss:$9 sm:$0xff] %v141
      %v150 = vld [vmem:[#allocation1] sm:$0xff]
      %vm152 = vcmask 1042432
      %v153 = vsel %vm152, %v150, 0.0
      %154 = vadd.xlane.f32.xlu0 %v153
      %v155 = vpop.xlane.xlu0 %154
      %v156 = vld [vmem:[#allocation3] sm:$0x1]
      %v157 = vld [vmem:[#allocation3 + $0x1] sm:$0x1]
      %v158 = vld [vmem:[#allocation3 + $0x2] sm:$0x1]
      %v159 = vadd.f32 %v156, 0.0
      %v160 = vadd.f32 %v157, 0.0
      %v161 = vadd.f32 %v158, 0.0
      %165 = vst [vmem:[#allocation1] ss:$9 sm:$0xff] %v159
      %s166 = scalar_lea.vmem [#allocation1], 1
      %167 = vst [vmem:[%s166] ss:$9 sm:$0xff] %v160
      %s168 = scalar_lea.vmem [#allocation1], 2
      %169 = vst [vmem:[%s168] ss:$9 sm:$0xff] %v161
      %v170 = vld [vmem:[#allocation1] sm:$0xff]
      %v172 = vsel %vm152, %v170, 0.0
      %173 = vadd.xlane.f32.xlu0 %v172
      %v174 = vpop.xlane.xlu0 %173
      %v175 = vld [vmem:[#allocation4] sm:$0x1]
      %v176 = vld [vmem:[#allocation4 + $0x1] sm:$0x1]
      %v177 = vld [vmem:[#allocation4 + $0x2] sm:$0x1]
      %v178 = vadd.f32 %v175, 0.0
      %v179 = vadd.f32 %v176, 0.0
      %v180 = vadd.f32 %v177, 0.0
      %184 = vst [vmem:[#allocation1] ss:$9 sm:$0xff] %v178
      %s185 = scalar_lea.vmem [#allocation1], 1
      %186 = vst [vmem:[%s185] ss:$9 sm:$0xff] %v179
      %s187 = scalar_lea.vmem [#allocation1], 2
      %188 = vst [vmem:[%s187] ss:$9 sm:$0xff] %v180
      %v189 = vld [vmem:[#allocation1] sm:$0xff]
      %v191 = vsel %vm152, %v189, 0.0
      %192 = vadd.xlane.f32.xlu0 %v191
      %v193 = vpop.xlane.xlu0 %192
      %v194 = vsub.f32 %v174, %v155
      %v195 = vsub.f32 %v193, %v155
      %v196 = vadd.f32 %v155, %v194
      %v197 = vadd.f32 %v196, 1e-07
      %v198 = vrcp.pop %v197
      %v199 = vmul.f32 %v197, %v198
      %v200 = vsub.f32 1.0, %v199
      %v201 = vmul.f32 %v198, %v200
      %v202 = vadd.f32 %v198, %v201
      %vm203 = vweird.f32 %v197
      %vm204 = vweird.f32 %v198
      %vm205 = vmor %vm203, %vm204
      %v206 = vsel %vm205, %v198, %v202
      %v207 = vand.u32 2147483647, %v197
      %vm208 = vcmp.eq.f32.partialorder %v207, 8.507059e+37
      %v209 = vand.u32 %v197, 2147483648
      %v210 = vor.u32 1.1754944e-38, %v209
      %v211 = vsel %vm208, %v210, %v206
      %v212 = vmul.f32 %v155, %v211
      %v213 = vadd.f32 %v155, %v195
      %v214 = vadd.f32 %v213, 1e-07
      %v215 = vrcp.pop %v214
      %v216 = vmul.f32 %v214, %v215
      %v217 = vsub.f32 1.0, %v216
      %v218 = vmul.f32 %v215, %v217
      %v219 = vadd.f32 %v215, %v218
      %vm220 = vweird.f32 %v214
      %vm221 = vweird.f32 %v215
      %vm222 = vmor %vm220, %vm221
      %v223 = vsel %vm222, %v215, %v219
      %v224 = vand.u32 2147483647, %v214
      %vm225 = vcmp.eq.f32.partialorder %v224, 8.507059e+37
      %v226 = vand.u32 %v214, 2147483648
      %v227 = vor.u32 1.1754944e-38, %v226
      %v228 = vsel %vm225, %v227, %v223
      %v229 = vmul.f32 %v155, %v228
      %v230 = vmul.f32 %v212, 2.0
      %v231 = vmul.f32 %v230, %v229
      %v232 = vadd.f32 %v212, %v229
      %v233 = vadd.f32 %v232, 1e-07
      %v234 = vrcp.pop %v233
      %v235 = vmul.f32 %v233, %v234
      %v236 = vsub.f32 1.0, %v235
      %v237 = vmul.f32 %v234, %v236
      %v238 = vadd.f32 %v234, %v237
      %vm239 = vweird.f32 %v233
      %vm240 = vweird.f32 %v234
      %vm241 = vmor %vm239, %vm240
      %v242 = vsel %vm241, %v234, %v238
      %v243 = vand.u32 2147483647, %v233
      %vm244 = vcmp.eq.f32.partialorder %v243, 8.507059e+37
      %v245 = vand.u32 %v233, 2147483648
      %v246 = vor.u32 1.1754944e-38, %v245
      %v247 = vsel %vm244, %v246, %v242
      %v248 = vmul.f32 %v231, %v247
      %v249 = vmax.f32 %v248, 1e-07
      %v250 = vmin.f32 %v249, 0.9999999
      %vm251 = vcmask 2048
      %v252 = vsel %vm251, %v250, 0.0
      %253 = vadd.xlane.f32.xlu0 %v252
      %v254 = vpop.xlane.xlu0 %253
      %v255 = vrot.slane %v254, 4
      %v256 = vadd.f32 %v254, %v255
      %v257 = vrot.slane %v256, 2
      %v258 = vadd.f32 %v256, %v257
      %v259 = vrot.slane %v258, 1
      %v260 = vadd.f32 %v258, %v259
      %s261 = vtos %v260
      %v262 = vrcp.pop 3.0
      %v263 = vmul.f32 3.0, %v262
      %v264 = vsub.f32 1.0, %v263
      %v265 = vmul.f32 %v262, %v264
      %v266 = vadd.f32 %v262, %v265
      %vm267 = vweird.f32 %v262
      %v268 = vsel %vm267, %v262, %v266
      %s269 = vtos %v268
      %s270 = smul.f32 %s261, %s269
      %s271 = ssub.f32 1.0, %s270
      %s272 = scalar_lea.smem [#allocation10], 0
      %273 = sst [smem:[%s272]] %s271
    $region25: #{tpu_custom_call.1} parent=1 // pred_fallthru
      _
    // Predicated region
    $region26: #{tpu_custom_call.1} parent=1 // pred_check
      _
    $region27: #{tpu_custom_call.1} parent=1 // pred_check_branch
      %275 = sbr.rel (0) target = $region29
    $region28: #{tpu_custom_call.1} parent=1 // pred_region
      %277 = vsyncadd [#allocation7], 0
      %s279 = sshll.u32 %s2, 4
      %s280 = int_to_ptr.hbm [resolvable:$true] %s279
      %282 = dma.smem_to_hbm [#allocation10], 16, %s280, [#allocation7]
    $region29: #{tpu_custom_call.1} parent=1 // pred_fallthru
      _
    // Predicated region
    $region30: #{tpu_custom_call.1} parent=1 // pred_check
      _
    $region31: #{tpu_custom_call.1} parent=1 // pred_check_branch
      %284 = sbr.rel (0) target = $region33
    $region32: #{tpu_custom_call.1} parent=1 // pred_region
      %286 = dma.done [#allocation7], 16
    $region33: #{tpu_custom_call.1} parent=1 // pred_fallthru
      _
    %287 = sfence
    %288 = vsyncpa [#allocation6], 1
    %289 = vsyncpa [#allocation9], 1
    %290 = vsyncpa [#allocation7], 1

</llo_original>
